<compile_context>
chip_gen: v7x
topology: tpu7x:2x2x1
jax: 0.10.0
libtpu: 0.0.40
codegen_flags: <defaults>
</compile_context>

<pallas_src>
import numpy as np
import jax
import jax.numpy as jnp
from jax.experimental import pallas as pl
from jax.experimental.pallas import tpu as pltpu


_CLS_PAD = 8     # class axis padded to one sublane group (ncls=3 -> 8 rows)
_COORD_ROWS = 8  # batch row + 4 coord rows + 3 pad rows (sublane-aligned)


def _round_up(x, m):
    return ((x + m - 1) // m) * m


def _choose_tile(n, tn_max):
    """Lane-axis point tile: multiple of 128, and >= 2 grid steps when possible
    (v7x has 2 TensorCores; a 1-step grid leaves a core idle)."""
    if n <= 128:
        return max(n, 1)
    tn_max = max(128, (tn_max // 128) * 128)
    return max(128, min(tn_max, _round_up(pl.cdiv(n, 2), 128)))


# ----------------------------------------------------------------------------
# Fused kernel: quantize/rescale coords + batch-index row + backbone stand-in
# ----------------------------------------------------------------------------
def _fused_kernel(offsets_ref,          # SMEM (B,) int32: cumulative cloud ends
                  xt_ref,               # (4, TN) raw coords, points on lanes
                  invq_ref, q_ref,      # (4, 1) 1/quant and quant
                  w1_ref, b1_ref,       # (1, H)
                  w2t_ref, b2_ref,      # (8, H), (8, 1) class-padded, transposed
                  coord_ref,            # out (8, TN): [batch, x*q, y*q, z*q, t*q, 0,0,0]
                  logit_ref):           # out (8, TN): rows = per-class logits
    tn = xt_ref.shape[1]

    # --- voxelize: floor(x * (1/quant)) then rescale by quant (lane-dense).
    # TODO(synk): multiply-by-reciprocal can differ from a true divide by 1 ulp
    # at exact voxel boundaries; acceptable for this voxelization.
    x = xt_ref[...]                                      # (4, tn)
    qc = jnp.floor(x * invq_ref[...])                    # (4,1) bcast over lanes
    rc = qc * q_ref[...]

    # --- per-point batch index from per-cloud end offsets (scalar prefetch),
    # computed lane-dense as (1, tn).
    pid = pl.program_id(0)
    pt_idx = pid * tn + jax.lax.broadcasted_iota(jnp.int32, (1, tn), 1)
    bidx = jnp.zeros((1, tn), jnp.float32)
    for b in range(offsets_ref.shape[0] - 1):            # static unroll, B-1 cmps
        bidx = bidx + (pt_idx >= offsets_ref[b]).astype(jnp.float32)

    # Direct row writes (no lane-axis concatenate).
    coord_ref[0:1, :] = bidx
    coord_ref[1:5, :] = rc
    coord_ref[5:8, :] = jnp.zeros((3, tn), jnp.float32)

    # --- backbone stand-in.
    # TODO(synk): MinkowskiEngine's 4D generative sparse-conv UNet (hash kernel
    # maps + neighbor gathers) and the TensorField->SparseTensor
    # UNWEIGHTED_AVERAGE dedup have no clean Pallas equivalent; stand-in is a
    # per-point MLP 1 -> H -> n_mos_cls.  Because every input feature is the
    # constant 0.5, the MLP collapses to one per-class scalar computed once per
    # tile and broadcast across points.  THIS HOIST IS ONLY VALID FOR THE
    # CONSTANT-FEATURE PLACEHOLDER and must revert to per-point compute (MXU
    # contraction with K, N in multiples of 128/256) when real features land.
    h = jnp.maximum(0.5 * w1_ref[...] + b1_ref[...], 0.0)                       # (1, H)
    logit_col = jnp.sum(w2t_ref[...] * h, axis=1, keepdims=True) + b2_ref[...]  # (8, 1)
    logit_ref[...] = jnp.broadcast_to(logit_col, logit_ref.shape).astype(logit_ref.dtype)


def _fused_forward(coords_t, offsets, params, quant, *, tn_max=4096):
    """coords_t: (4, N) f32 collated/transposed points; offsets: (B,) int32
    cumulative cloud ends.  Returns transposed (8, N) coords and logits."""
    n = coords_t.shape[1]
    hid = params["w1"].shape[1]
    ncls = params["w2"].shape[1]
    assert ncls <= _CLS_PAD

    quant_c = quant.reshape(4, 1).astype(jnp.float32)
    invq_c = (1.0 / quant_c).astype(jnp.float32)
    w1 = params["w1"].reshape(1, hid).astype(jnp.float32)
    b1 = params["b1"].reshape(1, hid).astype(jnp.float32)
    # Class axis padded to 8 sublanes; padding rows produce logits never read.
    w2t = jnp.zeros((_CLS_PAD, hid), jnp.float32).at[:ncls, :].set(
        params["w2"].astype(jnp.float32).T)
    b2c = jnp.zeros((_CLS_PAD, 1), jnp.float32).at[:ncls, 0].set(
        params["b2"].reshape(ncls).astype(jnp.float32))

    tn = _choose_tile(n, tn_max)
    grid = (pl.cdiv(n, tn),)

    # Traffic is dominated by the (4,N) input and the two (8,N) outputs.
    cost = pl.CostEstimate(
        flops=int(24 * n),
        transcendentals=0,
        bytes_accessed=int(n * 4 * (4 + _COORD_ROWS + _CLS_PAD)))

    coords_out_t, logits_t = pl.pallas_call(
        _fused_kernel,
        out_shape=(jax.ShapeDtypeStruct((_COORD_ROWS, n), jnp.float32),
                   jax.ShapeDtypeStruct((_CLS_PAD, n), jnp.float32)),
        grid_spec=pltpu.PrefetchScalarGridSpec(
            num_scalar_prefetch=1,
            grid=grid,
            in_specs=[pl.BlockSpec((4, tn), lambda i, offs: (0, i)),
                      pl.BlockSpec((4, 1), lambda i, offs: (0, 0)),
                      pl.BlockSpec((4, 1), lambda i, offs: (0, 0)),
                      pl.BlockSpec((1, hid), lambda i, offs: (0, 0)),
                      pl.BlockSpec((1, hid), lambda i, offs: (0, 0)),
                      pl.BlockSpec((_CLS_PAD, hid), lambda i, offs: (0, 0)),
                      pl.BlockSpec((_CLS_PAD, 1), lambda i, offs: (0, 0))],
            out_specs=[pl.BlockSpec((_COORD_ROWS, tn), lambda i, offs: (0, i)),
                       pl.BlockSpec((_CLS_PAD, tn), lambda i, offs: (0, i))]),
        compiler_params=pltpu.CompilerParams(
            dimension_semantics=("parallel",)),
        cost_estimate=cost,
    )(offsets, coords_t, invq_c, quant_c, w1, b1, w2t, b2c)

    return coords_out_t, logits_t


# ----------------------------------------------------------------------------
# Model wrapper (glue: collate clouds, cumulative offsets, parameter setup)
# ----------------------------------------------------------------------------
def init_params(key, in_channels=1, hidden=32, n_mos_cls=3):
    k1, k2 = jax.random.split(key)
    return {
        "w1": (0.1 * jax.random.normal(k1, (in_channels, hidden))
               ).astype(jnp.float32),
        "b1": jnp.zeros((1, hidden), jnp.float32),
        "w2": (0.1 * jax.random.normal(k2, (hidden, n_mos_cls))
               ).astype(jnp.float32),
        "b2": jnp.zeros((1, n_mos_cls), jnp.float32),
    }


def mos_model_forward(pcds_4d_batch, params, quant, *, tn_max=4096):
    """Returns dict(coordinates=(N,5), features=(N,n_mos_cls)) like the sliced
    TensorField: column 0 is the batch index, columns 1:5 are quantized coords
    rescaled by `quant`.  tn_max is the lane-axis point tile; 4096-8192 is a
    good range on all generations (~80 B/point of VMEM per tile, so even 8192
    double-buffered stays ~1.3 MB -- safe on v7x's 64 MiB VMEM)."""
    # sparse_collate: concat clouds along the point axis; transposed so points
    # ride the lane axis inside the kernel.
    coords_t = jnp.concatenate([jnp.asarray(p, jnp.float32).T
                                for p in pcds_4d_batch], axis=1)      # (4, N)
    counts = np.cumsum([int(p.shape[0]) for p in pcds_4d_batch]).astype(np.int32)
    offsets = jnp.asarray(counts)

    coords_out_t, logits_t = _fused_forward(coords_t, offsets, params, quant,
                                            tn_max=tn_max)
    ncls = params["w2"].shape[1]
    # Cheap wrapper-side slice+transpose back to the module's (N,5)/(N,ncls)
    # convention: reads ~32 B/point total (vs. 512 B/point with the old
    # 128-wide padded-slab slice).
    return {"coordinates": coords_out_t[:5, :].T,
            "features": logits_t[:ncls, :].T}


if __name__ == "__main__":
    cfg_model = {
        "pos_dim": 4,
        "quant_size": 0.1,
        "scene_bbox": [-50.0, -50.0, -4.0, 50.0, 50.0, 2.0],
    }
    n_mos_cls = 3
    hidden = 32
    quant = jnp.array([cfg_model["quant_size"]] * 3 + [1.0], jnp.float32)

    key = jax.random.PRNGKey(0)
    kp, k0, k1 = jax.random.split(key, 3)
    params = init_params(kp, in_channels=1, hidden=hidden, n_mos_cls=n_mos_cls)

    lo = jnp.array(cfg_model["scene_bbox"][:3], jnp.float32)
    hi = jnp.array(cfg_model["scene_bbox"][3:], jnp.float32)

    def make_cloud(k, n_pts):
        ka, kb = jax.random.split(k)
        xyz = jax.random.uniform(ka, (n_pts, 3), jnp.float32) * (hi - lo) + lo
        t = jnp.floor(jax.random.uniform(kb, (n_pts, 1), jnp.float32) * 8.0)
        return jnp.concatenate([xyz, t], axis=1)

    # Two clouds with unequal sizes so the batch boundary falls inside a tile.
    pcds_4d_batch = [make_cloud(k0, 1000), make_cloud(k1, 1048)]
    n_total = 1000 + 1048

    out = mos_model_forward(pcds_4d_batch, params, quant)
    jax.block_until_ready(out)

    # --- pure-JAX reference -------------------------------------------------
    coords = jnp.concatenate(pcds_4d_batch, axis=0)
    q = quant.reshape(1, 4)
    qc_ref = jnp.floor(coords * (1.0 / q))
    bidx = jnp.concatenate([jnp.full((p.shape[0],), i, jnp.float32)
                            for i, p in enumerate(pcds_4d_batch)])[:, None]
    ref_coords = jnp.concatenate([bidx, qc_ref * q], axis=1)
    h_row = jnp.maximum(0.5 * params["w1"] + params["b1"], 0.0)          # (1, H)
    ref_row = (h_row[0, :, None] * params["w2"]).sum(axis=0)[None, :] + params["b2"]
    ref_logits = jnp.broadcast_to(ref_row, (n_total, n_mos_cls))

    assert out["coordinates"].shape == (n_total, 5)
    assert out["features"].shape == (n_total, n_mos_cls)
    assert bool(jnp.allclose(out["coordinates"], ref_coords,
                             atol=1e-6, rtol=1e-6)), "coordinates mismatch"
    assert bool(jnp.allclose(out["features"], ref_logits,
                             atol=1e-5, rtol=1e-5)), "features mismatch"
    print("KERNEL_OK")
</pallas_src>

<mosaic_0001>
module attributes {stable_mosaic.version = 11 : i64} {
  func.func @_fused_kernel(%arg0: i32, %arg1: memref<2xi32, #tpu.memory_space<smem>>, %arg2: memref<4x1024xf32, #tpu.memory_space<vmem>>, %arg3: memref<4x1xf32, #tpu.memory_space<vmem>>, %arg4: memref<4x1xf32, #tpu.memory_space<vmem>>, %arg5: memref<1x32xf32, #tpu.memory_space<vmem>>, %arg6: memref<1x32xf32, #tpu.memory_space<vmem>>, %arg7: memref<8x32xf32, #tpu.memory_space<vmem>>, %arg8: memref<8x1xf32, #tpu.memory_space<vmem>>, %arg9: memref<8x1024xf32, #tpu.memory_space<vmem>>, %arg10: memref<8x1024xf32, #tpu.memory_space<vmem>>) attributes {dimension_semantics = [#tpu.dimension_semantics<parallel>], iteration_bounds = array<i64: 2>, scalar_prefetch = 1 : i64, scratch_operands = 0 : i64, tpu.core_type = #tpu.core_type<tc>, window_params = [{transform_indices = @transform_0, window_bounds = array<i64: 4, 1024>}, {pipeline_mode = #tpu.pipeline_mode<synchronous>, transform_indices = @transform_1, window_bounds = array<i64: 4, 1>}, {pipeline_mode = #tpu.pipeline_mode<synchronous>, transform_indices = @transform_2, window_bounds = array<i64: 4, 1>}, {pipeline_mode = #tpu.pipeline_mode<synchronous>, transform_indices = @transform_3, window_bounds = array<i64: 1, 32>}, {pipeline_mode = #tpu.pipeline_mode<synchronous>, transform_indices = @transform_4, window_bounds = array<i64: 1, 32>}, {pipeline_mode = #tpu.pipeline_mode<synchronous>, transform_indices = @transform_5, window_bounds = array<i64: 8, 32>}, {pipeline_mode = #tpu.pipeline_mode<synchronous>, transform_indices = @transform_6, window_bounds = array<i64: 8, 1>}, {transform_indices = @transform_7, window_bounds = array<i64: 8, 1024>}, {transform_indices = @transform_8, window_bounds = array<i64: 8, 1024>}]} {
    %c0 = arith.constant 0 : index
    %c0_0 = arith.constant 0 : index
    %0 = vector.load %arg2[%c0, %c0_0] : memref<4x1024xf32, #tpu.memory_space<vmem>>, vector<4x1024xf32>
    %c0_1 = arith.constant 0 : index
    %c0_2 = arith.constant 0 : index
    %1 = vector.load %arg3[%c0_1, %c0_2] : memref<4x1xf32, #tpu.memory_space<vmem>>, vector<4x1xf32>
    %2 = vector.broadcast %1 : vector<4x1xf32> to vector<4x1024xf32>
    %3 = arith.mulf %0, %2 : vector<4x1024xf32>
    %4 = math.floor %3 : vector<4x1024xf32>
    %c0_3 = arith.constant 0 : index
    %c0_4 = arith.constant 0 : index
    %5 = vector.load %arg4[%c0_3, %c0_4] : memref<4x1xf32, #tpu.memory_space<vmem>>, vector<4x1xf32>
    %6 = vector.broadcast %5 : vector<4x1xf32> to vector<4x1024xf32>
    %7 = arith.mulf %4, %6 : vector<4x1024xf32>
    %c1024_i32 = arith.constant 1024 : i32
    %8 = arith.muli %arg0, %c1024_i32 : i32
    %9 = tpu.iota {dimensions = array<i32: 1>} : vector<1x1024xi32>
    %10 = vector.broadcast %8 : i32 to vector<1x1024xi32>
    %11 = arith.addi %10, %9 : vector<1x1024xi32>
    %cst = arith.constant 0.000000e+00 : f32
    %12 = vector.broadcast %cst : f32 to vector<1x1024xf32>
    %c0_5 = arith.constant 0 : index
    %13 = memref.load %arg1[%c0_5] : memref<2xi32, #tpu.memory_space<smem>>
    %14 = vector.broadcast %13 : i32 to vector<1x1024xi32>
    %15 = arith.cmpi sge, %11, %14 : vector<1x1024xi32>
    %16 = arith.extui %15 : vector<1x1024xi1> to vector<1x1024xi32>
    %17 = arith.sitofp %16 : vector<1x1024xi32> to vector<1x1024xf32>
    %18 = arith.addf %12, %17 : vector<1x1024xf32>
    %c0_6 = arith.constant 0 : index
    %c0_7 = arith.constant 0 : index
    %19 = vector.load %arg9[%c0_6, %c0_7] : memref<8x1024xf32, #tpu.memory_space<vmem>>, vector<1x1024xf32>
    tpu.vector_store %arg9[%c0_6, %c0_7], %18 {strides = array<i32>} : memref<8x1024xf32, #tpu.memory_space<vmem>>, vector<1x1024xf32>,
    %c1 = arith.constant 1 : index
    %c0_8 = arith.constant 0 : index
    %20 = vector.load %arg9[%c1, %c0_8] : memref<8x1024xf32, #tpu.memory_space<vmem>>, vector<4x1024xf32>
    tpu.vector_store %arg9[%c1, %c0_8], %7 {strides = array<i32>} : memref<8x1024xf32, #tpu.memory_space<vmem>>, vector<4x1024xf32>,
    %cst_9 = arith.constant 0.000000e+00 : f32
    %21 = vector.broadcast %cst_9 : f32 to vector<3x1024xf32>
    %c5 = arith.constant 5 : index
    %c0_10 = arith.constant 0 : index
    %22 = vector.load %arg9[%c5, %c0_10] : memref<8x1024xf32, #tpu.memory_space<vmem>>, vector<3x1024xf32>
    tpu.vector_store %arg9[%c5, %c0_10], %21 {strides = array<i32>} : memref<8x1024xf32, #tpu.memory_space<vmem>>, vector<3x1024xf32>,
    %c0_11 = arith.constant 0 : index
    %c0_12 = arith.constant 0 : index
    %23 = vector.load %arg5[%c0_11, %c0_12] : memref<1x32xf32, #tpu.memory_space<vmem>>, vector<1x32xf32>
    %cst_13 = arith.constant 5.000000e-01 : f32
    %24 = vector.broadcast %cst_13 : f32 to vector<1x32xf32>
    %25 = arith.mulf %24, %23 : vector<1x32xf32>
    %c0_14 = arith.constant 0 : index
    %c0_15 = arith.constant 0 : index
    %26 = vector.load %arg6[%c0_14, %c0_15] : memref<1x32xf32, #tpu.memory_space<vmem>>, vector<1x32xf32>
    %27 = arith.addf %25, %26 : vector<1x32xf32>
    %cst_16 = arith.constant 0.000000e+00 : f32
    %28 = vector.broadcast %cst_16 : f32 to vector<1x32xf32>
    %29 = arith.maximumf %27, %28 : vector<1x32xf32>
    %c0_17 = arith.constant 0 : index
    %c0_18 = arith.constant 0 : index
    %30 = vector.load %arg7[%c0_17, %c0_18] : memref<8x32xf32, #tpu.memory_space<vmem>>, vector<8x32xf32>
    %31 = vector.broadcast %29 : vector<1x32xf32> to vector<8x32xf32>
    %32 = arith.mulf %30, %31 : vector<8x32xf32>
    %cst_19 = arith.constant dense<0.000000e+00> : vector<8xf32>
    %33 = vector.multi_reduction <add>, %32, %cst_19 [1] : vector<8x32xf32> to vector<8xf32>
    %34 = vector.shape_cast %33 : vector<8xf32> to vector<8x1xf32>
    %c0_20 = arith.constant 0 : index
    %c0_21 = arith.constant 0 : index
    %35 = vector.load %arg8[%c0_20, %c0_21] : memref<8x1xf32, #tpu.memory_space<vmem>>, vector<8x1xf32>
    %36 = arith.addf %34, %35 : vector<8x1xf32>
    %37 = vector.shape_cast %36 : vector<8x1xf32> to vector<8x1xf32>
    %38 = vector.broadcast %37 : vector<8x1xf32> to vector<8x1024xf32>
    %c0_22 = arith.constant 0 : index
    %c0_23 = arith.constant 0 : index
    %39 = vector.load %arg10[%c0_22, %c0_23] : memref<8x1024xf32, #tpu.memory_space<vmem>>, vector<8x1024xf32>
    tpu.vector_store %arg10[%c0_22, %c0_23], %38 {strides = array<i32>} : memref<8x1024xf32, #tpu.memory_space<vmem>>, vector<8x1024xf32>,
    return
  }
  func.func @transform_0(%arg0: i32, %arg1: memref<2xi32, #tpu.memory_space<smem>>) -> (i32, i32) {
    %c0_i32 = arith.constant 0 : i32
    %c0_i32_0 = arith.constant 0 : i32
    return %c0_i32, %arg0 : i32, i32
  }
  func.func @transform_1(%arg0: i32, %arg1: memref<2xi32, #tpu.memory_space<smem>>) -> (i32, i32) {
    %c0_i32 = arith.constant 0 : i32
    %c0_i32_0 = arith.constant 0 : i32
    %c0_i32_1 = arith.constant 0 : i32
    return %c0_i32, %c0_i32_0 : i32, i32
  }
  func.func @transform_2(%arg0: i32, %arg1: memref<2xi32, #tpu.memory_space<smem>>) -> (i32, i32) {
    %c0_i32 = arith.constant 0 : i32
    %c0_i32_0 = arith.constant 0 : i32
    %c0_i32_1 = arith.constant 0 : i32
    return %c0_i32, %c0_i32_0 : i32, i32
  }
  func.func @transform_3(%arg0: i32, %arg1: memref<2xi32, #tpu.memory_space<smem>>) -> (i32, i32) {
    %c0_i32 = arith.constant 0 : i32
    %c0_i32_0 = arith.constant 0 : i32
    %c0_i32_1 = arith.constant 0 : i32
    return %c0_i32, %c0_i32_0 : i32, i32
  }
  func.func @transform_4(%arg0: i32, %arg1: memref<2xi32, #tpu.memory_space<smem>>) -> (i32, i32) {
    %c0_i32 = arith.constant 0 : i32
    %c0_i32_0 = arith.constant 0 : i32
    %c0_i32_1 = arith.constant 0 : i32
    return %c0_i32, %c0_i32_0 : i32, i32
  }
  func.func @transform_5(%arg0: i32, %arg1: memref<2xi32, #tpu.memory_space<smem>>) -> (i32, i32) {
    %c0_i32 = arith.constant 0 : i32
    %c0_i32_0 = arith.constant 0 : i32
    %c0_i32_1 = arith.constant 0 : i32
    return %c0_i32, %c0_i32_0 : i32, i32
  }
  func.func @transform_6(%arg0: i32, %arg1: memref<2xi32, #tpu.memory_space<smem>>) -> (i32, i32) {
    %c0_i32 = arith.constant 0 : i32
    %c0_i32_0 = arith.constant 0 : i32
    %c0_i32_1 = arith.constant 0 : i32
    return %c0_i32, %c0_i32_0 : i32, i32
  }
  func.func @transform_7(%arg0: i32, %arg1: memref<2xi32, #tpu.memory_space<smem>>) -> (i32, i32) {
    %c0_i32 = arith.constant 0 : i32
    %c0_i32_0 = arith.constant 0 : i32
    return %c0_i32, %arg0 : i32, i32
  }
  func.func @transform_8(%arg0: i32, %arg1: memref<2xi32, #tpu.memory_space<smem>>) -> (i32, i32) {
    %c0_i32 = arith.constant 0 : i32
    %c0_i32_0 = arith.constant 0 : i32
    return %c0_i32, %arg0 : i32, i32
  }
}

</mosaic_0001>

<llo_original>
// kernel: tpu_custom_call.1
$region0: #{tpu_custom_call.1}
  #allocation0 [shape = 'u32[]', space=smem, size = 0x4, offset = 0x4, fixed_abs, tag = 'smem constant byte address 0x4 - core index']
  #allocation1 [shape = 'u32[144,128]{1,0:T(1,128)}', space=vmem, size = 0x12000, scoped, tag = 'internal scratch']
  #allocation2 [shape = 's32[1]{0}', space=sflag, size = 0x4, scoped, tag = 'scoped memory for tpu_custom_call.1']
  #allocation3 [shape = 'u8[512]{0}', space=smem, size = 0x200, scoped, tag = 'prefetched SMEM operand 0']
  %s0 = inlined_call_operand.vmem [shape: s32[2], index: 0, kind: input, shape index: {}]
  %s1 = inlined_call_operand.hbm [shape: f32[4,2048], index: 1, kind: input, shape index: {}]
  %s2 = inlined_call_operand.vmem [shape: f32[4,1], index: 2, kind: input, shape index: {}]
  %s3 = inlined_call_operand.vmem [shape: f32[4,1], index: 3, kind: input, shape index: {}]
  %s4 = inlined_call_operand.vmem [shape: f32[1,32], index: 4, kind: input, shape index: {}]
  %s5 = inlined_call_operand.vmem [shape: f32[1,32], index: 5, kind: input, shape index: {}]
  %s6 = inlined_call_operand.vmem [shape: f32[8,32], index: 6, kind: input, shape index: {}]
  %s7 = inlined_call_operand.vmem [shape: f32[8,1], index: 7, kind: input, shape index: {}]
  %s8 = inlined_call_operand.hbm [shape: f32[8,2048], index: 8, kind: output, shape index: {0}]
  %s9 = inlined_call_operand.hbm [shape: f32[8,2048], index: 9, kind: output, shape index: {1}]
  %10 = xla_tuple %s8, %s9
  %s11 = sld [smem:[#allocation0]]
  $region73: #{tpu_custom_call.1} parent=0
    _
  %s13 = ssub.s32 1, %s11
  %s14 = scalar_select 0, %s13, %s11
  %s15 = sshll.u32 %s0, 4
  %s16 = int_to_ptr.vmem [resolvable:$true] %s15
  %18 = dma.vmem_to_smem %s16, 16, [#allocation3], [#allocation2]
  %19 = dma.done [#allocation2], 16
  %20 = sfence
  $region1: #{tpu_custom_call.1} parent=0
    #allocation4 [shape = 'u8[32768]{0}', space=vmem, size = 0x8000, scoped, tag = 'input window, operand 1']
    #allocation5 [shape = 's32[2]{0}', space=sflag, size = 0x8, scoped, tag = 'scoped memory for tpu_custom_call.1']
    #allocation6 [shape = 's32[2]{0}', space=sflag, size = 0x8, scoped, tag = 'scoped memory for tpu_custom_call.1']
    #allocation7 [shape = 'u8[65536]{0}', space=vmem, size = 0x10000, scoped, tag = 'output window, operand 0']
    #allocation8 [shape = 'u8[65536]{0}', space=vmem, size = 0x10000, scoped, tag = 'output window, operand 1']
    #allocation9 [shape = 's32[2]{0}', space=sflag, size = 0x8, scoped, tag = 'scoped memory for tpu_custom_call.1']
    %21 = vsyncpa [#allocation5], 0
    %s22 = scalar_lea.sflag [#allocation5], 1
    %23 = vsyncpa %s22, 0
    %24 = vsyncpa [#allocation6], 0
    %s25 = scalar_lea.sflag [#allocation6], 1
    %26 = vsyncpa %s25, 0
    %27 = vsyncpa [#allocation9], 0
    %s28 = scalar_lea.sflag [#allocation9], 1
    %29 = vsyncpa %s28, 0
    loop: start=0, step=1, limit=4
    $region2: #{tpu_custom_call.1} parent=1 // loop_pre_header
      _
    $region3: #{tpu_custom_call.1} parent=1 // loop_header
      %s31 = sphi 0, %s35
      %p32 = scmp.ge.s32.totalorder %s31, 4
      %s41 = sphi 0, %s43
      %s44 = sphi 0, %s41
      %s45 = sphi 0, %s44
      %s61 = sphi 0, %s45
      %s65 = sphi 0, %s65
      %s67 = sphi 0, %s65
      %s68 = sphi 0, %s67
      %s82 = sphi 0, %s68
      %s86 = sphi 0, %s86
      %s88 = sphi 0, %s86
      %s89 = sphi 0, %s88
      %s103 = sphi 0, %s89
      %s107 = sphi 0, %s107
      %s109 = sphi 0, %s107
      %s110 = sphi 0, %s109
      %s124 = sphi 0, %s110
      %s128 = sphi 0, %s128
      %s130 = sphi 0, %s128
      %s131 = sphi 0, %s130
      %s145 = sphi 0, %s131
      %s149 = sphi 0, %s149
      %s151 = sphi 0, %s149
      %s152 = sphi 0, %s151
      %s166 = sphi 0, %s152
      %s170 = sphi 0, %s170
      %s172 = sphi 0, %s170
      %s173 = sphi 0, %s172
      %s187 = sphi 0, %s173
      %s193 = sphi 0, %s195
      %s196 = sphi 0, %s193
      %s197 = sphi 0, %s196
      %s213 = sphi 0, %s197
      %s219 = sphi 0, %s221
      %s222 = sphi 0, %s219
      %s223 = sphi 0, %s222
      %s239 = sphi 0, %s223
    $region4: #{tpu_custom_call.1} parent=1 // loop_header_branch
      %34 = sbr.rel (%p32) target = $region8
    $region5: #{tpu_custom_call.1} parent=1 // loop_body
      %s36 = ssub.s32 %s31, 1
      %s37 = ssub.s32 %s31, 2
      %s38 = sadd.s32 %s31, 1
      %s39 = ssub.s32 %s31, %s38
      %p40 = scmp.eq.s32.totalorder %s39, 0
      %s42 = sadd.s32 %s41, 1
      %s43 = scalar_select %p40, %s41, %s42
      %p46 = pneg %p40
      %p47 = scmp.eq.s32.totalorder %s31, 1
      %p48 = por %p46, %p47
      %p49 = scmp.ne.s32.totalorder %s41, %s44
      %p50 = scmp.eq.s32.totalorder %s31, 0
      %p51 = por %p49, %p50
      %p52 = scmp.ne.s32.totalorder %s41, %s44
      %p53 = scmp.eq.s32.totalorder %s36, 1
      %p54 = por %p52, %p53
      %p55 = scmp.ne.s32.totalorder %s44, %s45
      %p56 = scmp.eq.s32.totalorder %s36, 0
      %p57 = por %p55, %p56
      %p58 = scmp.ne.s32.totalorder %s44, %s45
      %p59 = scmp.eq.s32.totalorder %s37, 1
      %p60 = por %p58, %p59
      %p62 = scmp.ne.s32.totalorder %s45, %s61
      %p63 = scmp.eq.s32.totalorder %s37, 0
      %p64 = por %p62, %p63
      %s66 = sadd.s32 %s65, 1
      %p69 = scmp.eq.s32.totalorder %s31, 1
      %p70 = scmp.ne.s32.totalorder %s65, %s67
      %p71 = scmp.eq.s32.totalorder %s31, 0
      %p72 = por %p70, %p71
      %p73 = scmp.ne.s32.totalorder %s65, %s67
      %p74 = scmp.eq.s32.totalorder %s36, 1
      %p75 = por %p73, %p74
      %p76 = scmp.ne.s32.totalorder %s67, %s68
      %p77 = scmp.eq.s32.totalorder %s36, 0
      %p78 = por %p76, %p77
      %p79 = scmp.ne.s32.totalorder %s67, %s68
      %p80 = scmp.eq.s32.totalorder %s37, 1
      %p81 = por %p79, %p80
      %p83 = scmp.ne.s32.totalorder %s68, %s82
      %p84 = scmp.eq.s32.totalorder %s37, 0
      %p85 = por %p83, %p84
      %s87 = sadd.s32 %s86, 1
      %p90 = scmp.eq.s32.totalorder %s31, 1
      %p91 = scmp.ne.s32.totalorder %s86, %s88
      %p92 = scmp.eq.s32.totalorder %s31, 0
      %p93 = por %p91, %p92
      %p94 = scmp.ne.s32.totalorder %s86, %s88
      %p95 = scmp.eq.s32.totalorder %s36, 1
      %p96 = por %p94, %p95
      %p97 = scmp.ne.s32.totalorder %s88, %s89
      %p98 = scmp.eq.s32.totalorder %s36, 0
      %p99 = por %p97, %p98
      %p100 = scmp.ne.s32.totalorder %s88, %s89
      %p101 = scmp.eq.s32.totalorder %s37, 1
      %p102 = por %p100, %p101
      %p104 = scmp.ne.s32.totalorder %s89, %s103
      %p105 = scmp.eq.s32.totalorder %s37, 0
      %p106 = por %p104, %p105
      %s108 = sadd.s32 %s107, 1
      %p111 = scmp.eq.s32.totalorder %s31, 1
      %p112 = scmp.ne.s32.totalorder %s107, %s109
      %p113 = scmp.eq.s32.totalorder %s31, 0
      %p114 = por %p112, %p113
      %p115 = scmp.ne.s32.totalorder %s107, %s109
      %p116 = scmp.eq.s32.totalorder %s36, 1
      %p117 = por %p115, %p116
      %p118 = scmp.ne.s32.totalorder %s109, %s110
      %p119 = scmp.eq.s32.totalorder %s36, 0
      %p120 = por %p118, %p119
      %p121 = scmp.ne.s32.totalorder %s109, %s110
      %p122 = scmp.eq.s32.totalorder %s37, 1
      %p123 = por %p121, %p122
      %p125 = scmp.ne.s32.totalorder %s110, %s124
      %p126 = scmp.eq.s32.totalorder %s37, 0
      %p127 = por %p125, %p126
      %s129 = sadd.s32 %s128, 1
      %p132 = scmp.eq.s32.totalorder %s31, 1
      %p133 = scmp.ne.s32.totalorder %s128, %s130
      %p134 = scmp.eq.s32.totalorder %s31, 0
      %p135 = por %p133, %p134
      %p136 = scmp.ne.s32.totalorder %s128, %s130
      %p137 = scmp.eq.s32.totalorder %s36, 1
      %p138 = por %p136, %p137
      %p139 = scmp.ne.s32.totalorder %s130, %s131
      %p140 = scmp.eq.s32.totalorder %s36, 0
      %p141 = por %p139, %p140
      %p142 = scmp.ne.s32.totalorder %s130, %s131
      %p143 = scmp.eq.s32.totalorder %s37, 1
      %p144 = por %p142, %p143
      %p146 = scmp.ne.s32.totalorder %s131, %s145
      %p147 = scmp.eq.s32.totalorder %s37, 0
      %p148 = por %p146, %p147
      %s150 = sadd.s32 %s149, 1
      %p153 = scmp.eq.s32.totalorder %s31, 1
      %p154 = scmp.ne.s32.totalorder %s149, %s151
      %p155 = scmp.eq.s32.totalorder %s31, 0
      %p156 = por %p154, %p155
      %p157 = scmp.ne.s32.totalorder %s149, %s151
      %p158 = scmp.eq.s32.totalorder %s36, 1
      %p159 = por %p157, %p158
      %p160 = scmp.ne.s32.totalorder %s151, %s152
      %p161 = scmp.eq.s32.totalorder %s36, 0
      %p162 = por %p160, %p161
      %p163 = scmp.ne.s32.totalorder %s151, %s152
      %p164 = scmp.eq.s32.totalorder %s37, 1
      %p165 = por %p163, %p164
      %p167 = scmp.ne.s32.totalorder %s152, %s166
      %p168 = scmp.eq.s32.totalorder %s37, 0
      %p169 = por %p167, %p168
      %s171 = sadd.s32 %s170, 1
      %p174 = scmp.eq.s32.totalorder %s31, 1
      %p175 = scmp.ne.s32.totalorder %s170, %s172
      %p176 = scmp.eq.s32.totalorder %s31, 0
      %p177 = por %p175, %p176
      %p178 = scmp.ne.s32.totalorder %s170, %s172
      %p179 = scmp.eq.s32.totalorder %s36, 1
      %p180 = por %p178, %p179
      %p181 = scmp.ne.s32.totalorder %s172, %s173
      %p182 = scmp.eq.s32.totalorder %s36, 0
      %p183 = por %p181, %p182
      %p184 = scmp.ne.s32.totalorder %s172, %s173
      %p185 = scmp.eq.s32.totalorder %s37, 1
      %p186 = por %p184, %p185
      %p188 = scmp.ne.s32.totalorder %s173, %s187
      %p189 = scmp.eq.s32.totalorder %s37, 0
      %p190 = por %p188, %p189
      %s191 = ssub.s32 %s31, %s38
      %p192 = scmp.eq.s32.totalorder %s191, 0
      %s194 = sadd.s32 %s193, 1
      %s195 = scalar_select %p192, %s193, %s194
      %p198 = pneg %p192
      %p199 = scmp.eq.s32.totalorder %s31, 1
      %p200 = por %p198, %p199
      %p201 = scmp.ne.s32.totalorder %s193, %s196
      %p202 = scmp.eq.s32.totalorder %s31, 0
      %p203 = por %p201, %p202
      %p204 = scmp.ne.s32.totalorder %s193, %s196
      %p205 = scmp.eq.s32.totalorder %s36, 1
      %p206 = por %p204, %p205
      %p207 = scmp.ne.s32.totalorder %s196, %s197
      %p208 = scmp.eq.s32.totalorder %s36, 0
      %p209 = por %p207, %p208
      %p210 = scmp.ne.s32.totalorder %s196, %s197
      %p211 = scmp.eq.s32.totalorder %s37, 1
      %p212 = por %p210, %p211
      %p214 = scmp.ne.s32.totalorder %s197, %s213
      %p215 = scmp.eq.s32.totalorder %s37, 0
      %p216 = por %p214, %p215
      %s217 = ssub.s32 %s31, %s38
      %p218 = scmp.eq.s32.totalorder %s217, 0
      %s220 = sadd.s32 %s219, 1
      %s221 = scalar_select %p218, %s219, %s220
      %p224 = pneg %p218
      %p225 = scmp.eq.s32.totalorder %s31, 1
      %p226 = por %p224, %p225
      %p227 = scmp.ne.s32.totalorder %s219, %s222
      %p228 = scmp.eq.s32.totalorder %s31, 0
      %p229 = por %p227, %p228
      %p230 = scmp.ne.s32.totalorder %s219, %s222
      %p231 = scmp.eq.s32.totalorder %s36, 1
      %p232 = por %p230, %p231
      %p233 = scmp.ne.s32.totalorder %s222, %s223
      %p234 = scmp.eq.s32.totalorder %s36, 0
      %p235 = por %p233, %p234
      %p236 = scmp.ne.s32.totalorder %s222, %s223
      %p237 = scmp.eq.s32.totalorder %s37, 1
      %p238 = por %p236, %p237
      %p240 = scmp.ne.s32.totalorder %s223, %s239
      %p241 = scmp.eq.s32.totalorder %s37, 0
      %p242 = por %p240, %p241
      %p243 = scmp.le.s32.totalorder 1, %s31
      %p244 = scmp.lt.s32.totalorder %s31, 3
      %p245 = pnand %p243, %p244
      %p246 = pneg %p245
      // Predicated region
      $region9: #{tpu_custom_call.1} parent=5 // pred_check
        _
      $region10: #{tpu_custom_call.1} parent=5 // pred_check_branch
        %248 = sbr.rel (%p245) target = $region12
      $region11: #{tpu_custom_call.1} parent=5 // pred_region
        %s249 = ssub.s32 %s31, 1
        // Predicated region
        $region13: #{tpu_custom_call.1} parent=11 // pred_check
          %p250 = pneg %p78
        $region14: #{tpu_custom_call.1} parent=11 // pred_check_branch
          %252 = sbr.rel (%p250) target = $region16
        $region15: #{tpu_custom_call.1} parent=11 // pred_region
          _
        $region16: #{tpu_custom_call.1} parent=11 // pred_fallthru
          _
        // Predicated region
        $region17: #{tpu_custom_call.1} parent=11 // pred_check
          %p253 = pneg %p99
        $region18: #{tpu_custom_call.1} parent=11 // pred_check_branch
          %255 = sbr.rel (%p253) target = $region20
        $region19: #{tpu_custom_call.1} parent=11 // pred_region
          _
        $region20: #{tpu_custom_call.1} parent=11 // pred_fallthru
          _
        // Predicated region
        $region21: #{tpu_custom_call.1} parent=11 // pred_check
          %p256 = pneg %p120
        $region22: #{tpu_custom_call.1} parent=11 // pred_check_branch
          %258 = sbr.rel (%p256) target = $region24
        $region23: #{tpu_custom_call.1} parent=11 // pred_region
          _
        $region24: #{tpu_custom_call.1} parent=11 // pred_fallthru
          _
        // Predicated region
        $region25: #{tpu_custom_call.1} parent=11 // pred_check
          %p259 = pneg %p141
        $region26: #{tpu_custom_call.1} parent=11 // pred_check_branch
          %261 = sbr.rel (%p259) target = $region28
        $region27: #{tpu_custom_call.1} parent=11 // pred_region
          _
        $region28: #{tpu_custom_call.1} parent=11 // pred_fallthru
          _
        // Predicated region
        $region29: #{tpu_custom_call.1} parent=11 // pred_check
          %p262 = pneg %p162
        $region30: #{tpu_custom_call.1} parent=11 // pred_check_branch
          %264 = sbr.rel (%p262) target = $region32
        $region31: #{tpu_custom_call.1} parent=11 // pred_region
          _
        $region32: #{tpu_custom_call.1} parent=11 // pred_fallthru
          _
        // Predicated region
        $region33: #{tpu_custom_call.1} parent=11 // pred_check
          %p265 = pneg %p183
        $region34: #{tpu_custom_call.1} parent=11 // pred_check_branch
          %267 = sbr.rel (%p265) target = $region36
        $region35: #{tpu_custom_call.1} parent=11 // pred_region
          _
        $region36: #{tpu_custom_call.1} parent=11 // pred_fallthru
          _
      $region12: #{tpu_custom_call.1} parent=5 // pred_fallthru
        _
      %p268 = scmp.lt.s32.totalorder %s31, 2
      // Predicated region
      $region37: #{tpu_custom_call.1} parent=5 // pred_check
        %p269 = pneg %p268
      $region38: #{tpu_custom_call.1} parent=5 // pred_check_branch
        %271 = sbr.rel (%p269) target = $region40
      $region39: #{tpu_custom_call.1} parent=5 // pred_region
        // Predicated region
        $region41: #{tpu_custom_call.1} parent=39 // pred_check
          %p272 = pneg %p51
        $region42: #{tpu_custom_call.1} parent=39 // pred_check_branch
          %274 = sbr.rel (%p272) target = $region44
        $region43: #{tpu_custom_call.1} parent=39 // pred_region
          %s275 = sand.u32 %s41, 1
          %s276 = scalar_lea.sflag [#allocation5], %s275
          %s277 = sand.u32 %s41, 1
          %s278 = smul.addr %s277, 32
          %s279 = scalar_lea.vmem [#allocation4], %s278
          %s280 = smul.u32 8, %s31
          %s282 = ssub.s32 512, 512
          %283 = vsyncadd %s276, %s282
          %s284 = smul.addr %s280, 64
          %s285 = scalar_lea.hbm %s1, %s284
          %s287 = sshll.u32 %s279, 4
          %s288 = int_to_ptr.vmem [resolvable:$true] %s287
          %290 = dma.hbm_to_vmem [thread:$0]  %s285, 512, %s288, %s276
        $region44: #{tpu_custom_call.1} parent=39 // pred_fallthru
          _
      $region40: #{tpu_custom_call.1} parent=5 // pred_fallthru
        _
      %p291 = scmp.le.s32.totalorder 1, %s31
      %p292 = scmp.lt.s32.totalorder %s31, 3
      %p293 = pnand %p291, %p292
      %p294 = pneg %p293
      // Predicated region
      $region45: #{tpu_custom_call.1} parent=5 // pred_check
        _
      $region46: #{tpu_custom_call.1} parent=5 // pred_check_branch
        %296 = sbr.rel (%p293) target = $region48
      $region47: #{tpu_custom_call.1} parent=5 // pred_region
        %s297 = ssub.s32 %s31, 1
        %s298 = sand.u32 %s44, 1
        %s299 = scalar_lea.sflag [#allocation5], %s298
        %s300 = sand.u32 %s44, 1
        %s301 = smul.addr %s300, 32
        %s302 = scalar_lea.vmem [#allocation4], %s301
        // Predicated region
        $region49: #{tpu_custom_call.1} parent=47 // pred_check
          %p303 = pneg %p57
        $region50: #{tpu_custom_call.1} parent=47 // pred_check_branch
          %305 = sbr.rel (%p303) target = $region52
        $region51: #{tpu_custom_call.1} parent=47 // pred_region
          %306 = dma.done %s299, 512
        $region52: #{tpu_custom_call.1} parent=47 // pred_fallthru
          _
        %s307 = sand.u32 %s44, 1
        %s308 = scalar_lea.sflag [#allocation5], %s307
        %s309 = sand.u32 %s44, 1
        %s310 = smul.addr %s309, 32
        %s311 = scalar_lea.vmem [#allocation4], %s310
        %p312 = pneg %p57
        %p313 = pneg %p54
        %p314 = pneg %p78
        %p315 = pneg %p75
        %p316 = pneg %p99
        %p317 = pneg %p96
        %p318 = pneg %p120
        %p319 = pneg %p117
        %p320 = pneg %p141
        %p321 = pneg %p138
        %p322 = pneg %p162
        %p323 = pneg %p159
        %p324 = pneg %p183
        %p325 = pneg %p180
        %p326 = pneg %p209
        %p327 = pneg %p206
        %s328 = sand.u32 %s196, 1
        %s329 = scalar_lea.sflag [#allocation6], %s328
        %s330 = sand.u32 %s196, 1
        %s331 = smul.addr %s330, 64
        %s332 = scalar_lea.vmem [#allocation7], %s331
        %p333 = pneg %p235
        %p334 = pneg %p232
        %s335 = sand.u32 %s222, 1
        %s336 = scalar_lea.sflag [#allocation9], %s335
        %s337 = sand.u32 %s222, 1
        %s338 = smul.addr %s337, 64
        %s339 = scalar_lea.vmem [#allocation8], %s338
        %s340 = smul.u32 8, %s36
        %s341 = smul.u32 8, %s36
        %s342 = smul.u32 8, %s36
        %v343 = vld [vmem:[%s302] sm:$0xff]
        %v344 = vld [vmem:[%s302 + $0x8] sm:$0xff]
        %v345 = vld [vmem:[%s302 + $0x10] sm:$0xff]
        %v346 = vld [vmem:[%s302 + $0x18] sm:$0xff]
        %v347 = vld [vmem:[%s2] sm:$0xf]
        %349 = vset.pattern.permute.xlu0 0
        %350 = vperm.xlu0 %349, %v347
        %v351 = vpop.permute.xlu0 %350
        %v353 = vunpack.c.l.s4 839922192
        %v354 = vunpack.c.0.s8 %v353
        %v355 = vlaneseq
        %v356 = vshrl.u32 %v355, 7
        %v357 = vsub.s32 %v354, %v356
        %v358 = vrot.slane %v351, %v357
        %v360 = vmul.f32 %v343, %v358
        %v361 = vmul.f32 %v344, %v358
        %v362 = vmul.f32 %v345, %v358
        %v363 = vmul.f32 %v346, %v358
        %v364 = vfloor.f32 %v360
        %v365 = vfloor.f32 %v361
        %v366 = vfloor.f32 %v362
        %v367 = vfloor.f32 %v363
        %v368 = vld [vmem:[%s3] sm:$0xf]
        %370 = vset.pattern.permute.xlu0 0
        %371 = vperm.xlu0 %370, %v368
        %v372 = vpop.permute.xlu0 %371
        %v374 = vunpack.c.l.s4 839922192
        %v375 = vunpack.c.0.s8 %v374
        %v376 = vlaneseq
        %v377 = vshrl.u32 %v376, 7
        %v378 = vsub.s32 %v375, %v377
        %v379 = vrot.slane %v372, %v378
        %v381 = vmul.f32 %v364, %v379
        %v382 = vmul.f32 %v365, %v379
        %v383 = vmul.f32 %v366, %v379
        %v384 = vmul.f32 %v367, %v379
        %s385 = smul.u32 %s36, 1024
        %v386 = vlaneseq
        %v387 = vand.u32 %v386, 127
        %v388 = vadd.s32 %v387, 128
        %v389 = vadd.s32 %v387, 256
        %v390 = vadd.s32 %v387, 384
        %v391 = vadd.s32 %v387, 512
        %v392 = vadd.s32 %v387, 640
        %v393 = vadd.s32 %v387, 768
        %v394 = vadd.s32 %v387, 896
        %v395 = vstv %s385
        %v396 = vadd.s32 %v395, %v387
        %v397 = vadd.s32 %v395, %v388
        %v398 = vadd.s32 %v395, %v389
        %v399 = vadd.s32 %v395, %v390
        %v400 = vadd.s32 %v395, %v391
        %v401 = vadd.s32 %v395, %v392
        %v402 = vadd.s32 %v395, %v393
        %v403 = vadd.s32 %v395, %v394
        %s404 = sld [smem:[#allocation3]]
        %v405 = vstv %s404
        %vm406 = vcmp.ge.s32.totalorder %v396, %v405
        %vm407 = vcmp.ge.s32.totalorder %v397, %v405
        %vm408 = vcmp.ge.s32.totalorder %v398, %v405
        %vm409 = vcmp.ge.s32.totalorder %v399, %v405
        %vm410 = vcmp.ge.s32.totalorder %v400, %v405
        %vm411 = vcmp.ge.s32.totalorder %v401, %v405
        %vm412 = vcmp.ge.s32.totalorder %v402, %v405
        %vm413 = vcmp.ge.s32.totalorder %v403, %v405
        %v414 = vsel %vm406, 1, 0
        %v415 = vsel %vm407, 1, 0
        %v416 = vsel %vm408, 1, 0
        %v417 = vsel %vm409, 1, 0
        %v418 = vsel %vm410, 1, 0
        %v419 = vsel %vm411, 1, 0
        %v420 = vsel %vm412, 1, 0
        %v421 = vsel %vm413, 1, 0
        %v422 = vcvt.s32.f32 %v414
        %v423 = vcvt.s32.f32 %v415
        %v424 = vcvt.s32.f32 %v416
        %v425 = vcvt.s32.f32 %v417
        %v426 = vcvt.s32.f32 %v418
        %v427 = vcvt.s32.f32 %v419
        %v428 = vcvt.s32.f32 %v420
        %v429 = vcvt.s32.f32 %v421
        %v430 = vadd.f32 %v422, 0.0
        %v431 = vadd.f32 %v423, 0.0
        %v432 = vadd.f32 %v424, 0.0
        %v433 = vadd.f32 %v425, 0.0
        %v434 = vadd.f32 %v426, 0.0
        %v435 = vadd.f32 %v427, 0.0
        %v436 = vadd.f32 %v428, 0.0
        %v437 = vadd.f32 %v429, 0.0
        %v446 = vcombine.low %v430, %v431
        %v447 = vcombine.low %v432, %v433
        %v448 = vcombine.low %v434, %v435
        %v449 = vcombine.low %v436, %v437
        %v451 = vunpack.c.l.s4 1966171168
        %v452 = vunpack.c.0.s8 %v451
        %v453 = vlaneseq
        %v454 = vshrl.u32 %v453, 7
        %v455 = vsub.s32 %v452, %v454
        %v456 = vrot.slane %v446, %v455
        %v458 = vunpack.c.l.s4 1966171168
        %v459 = vunpack.c.0.s8 %v458
        %v460 = vlaneseq
        %v461 = vshrl.u32 %v460, 7
        %v462 = vsub.s32 %v459, %v461
        %v463 = vrot.slane %v447, %v462
        %v465 = vunpack.c.l.s4 1966171168
        %v466 = vunpack.c.0.s8 %v465
        %v467 = vlaneseq
        %v468 = vshrl.u32 %v467, 7
        %v469 = vsub.s32 %v466, %v468
        %v470 = vrot.slane %v448, %v469
        %v472 = vunpack.c.l.s4 1966171168
        %v473 = vunpack.c.0.s8 %v472
        %v474 = vlaneseq
        %v475 = vshrl.u32 %v474, 7
        %v476 = vsub.s32 %v473, %v475
        %v477 = vrot.slane %v449, %v476
        %v478 = vcombine.low %v456, %v463
        %v479 = vcombine.low %v470, %v477
        %v481 = vunpack.c.l.s4 1966171168
        %v482 = vunpack.c.0.s8 %v481
        %v483 = vlaneseq
        %v484 = vshrl.u32 %v483, 7
        %v485 = vsub.s32 %v482, %v484
        %v486 = vrot.slane %v478, %v485
        %v488 = vunpack.c.l.s4 1966171168
        %v489 = vunpack.c.0.s8 %v488
        %v490 = vlaneseq
        %v491 = vshrl.u32 %v490, 7
        %v492 = vsub.s32 %v489, %v491
        %v493 = vrot.slane %v479, %v492
        %v494 = vcombine.low %v486, %v493
        %496 = vst [vmem:[%s332] ss:$8 sm:$0xf] %v494
        %497 = vst [vmem:[%s332] ss:$8 sm:$0xf0] %v494
        %v502 = vcombine.high %v381, %v381
        %v503 = vcombine.high %v382, %v382
        %v504 = vcombine.high %v383, %v383
        %v505 = vcombine.high %v384, %v384
        %v506 = vrot.slane %v381, 7
        %v507 = vrot.slane %v502, 7
        %v508 = vrot.slane %v382, 7
        %v509 = vrot.slane %v503, 7
        %v510 = vrot.slane %v383, 7
        %v511 = vrot.slane %v504, 7
        %v512 = vrot.slane %v384, 7
        %v513 = vrot.slane %v505, 7
        %522 = vst [vmem:[%s332] sm:$0x1e] %v506
        %523 = vst [vmem:[%s332 + $0x8] sm:$0x1e] %v507
        %524 = vst [vmem:[%s332 + $0x10] sm:$0x1e] %v508
        %525 = vst [vmem:[%s332 + $0x18] sm:$0x1e] %v509
        %526 = vst [vmem:[%s332 + $0x20] sm:$0x1e] %v510
        %527 = vst [vmem:[%s332 + $0x28] sm:$0x1e] %v511
        %528 = vst [vmem:[%s332 + $0x30] sm:$0x1e] %v512
        %529 = vst [vmem:[%s332 + $0x38] sm:$0x1e] %v513
        %530 = vst [vmem:[%s332] sm:$0xe0] 0.0
        %531 = vst [vmem:[%s332 + $0x8] sm:$0xe0] 0.0
        %532 = vst [vmem:[%s332 + $0x10] sm:$0xe0] 0.0
        %533 = vst [vmem:[%s332 + $0x18] sm:$0xe0] 0.0
        %534 = vst [vmem:[%s332 + $0x20] sm:$0xe0] 0.0
        %535 = vst [vmem:[%s332 + $0x28] sm:$0xe0] 0.0
        %536 = vst [vmem:[%s332 + $0x30] sm:$0xe0] 0.0
        %537 = vst [vmem:[%s332 + $0x38] sm:$0xe0] 0.0
        %v538 = vld [vmem:[%s4] sm:$0x1]
        %v539 = vmul.f32 %v538, 0.5
        %v540 = vld [vmem:[%s5] sm:$0x1]
        %v541 = vadd.f32 %v539, %v540
        %v542 = vmax.f32 %v541, 0.0
        %v543 = vld [vmem:[%s6] sm:$0xff]
        %v545 = vlaneseq
        %v546 = vshrl.u32 %v545, 7
        %v547 = vsub.s32 0, %v546
        %v548 = vrot.slane %v542, %v547
        %v550 = vmul.f32 %v543, %v548
        %vm551 = vcmask 261120
        %v552 = vsel %vm551, %v550, 0.0
        %553 = vadd.xlane.f32.xlu0 %v552
        %v554 = vpop.xlane.xlu0 %553
        %v555 = vld [vmem:[%s7] sm:$0xff]
        %v556 = vadd.f32 %v554, %v555
        %558 = vset.pattern.permute.xlu0 0
        %559 = vperm.xlu0 %558, %v556
        %v560 = vpop.permute.xlu0 %559
        %562 = vst [vmem:[%s339] sm:$0xff] %v560
        %563 = vst [vmem:[%s339 + $0x8] sm:$0xff] %v560
        %564 = vst [vmem:[%s339 + $0x10] sm:$0xff] %v560
        %565 = vst [vmem:[%s339 + $0x18] sm:$0xff] %v560
        %566 = vst [vmem:[%s339 + $0x20] sm:$0xff] %v560
        %567 = vst [vmem:[%s339 + $0x28] sm:$0xff] %v560
        %568 = vst [vmem:[%s339 + $0x30] sm:$0xff] %v560
        %569 = vst [vmem:[%s339 + $0x38] sm:$0xff] %v560
        %s570 = sand.u32 %s196, 1
        %s571 = scalar_lea.sflag [#allocation6], %s570
        %s572 = sand.u32 %s196, 1
        %s573 = smul.addr %s572, 64
        %s574 = scalar_lea.vmem [#allocation7], %s573
        %s575 = sand.u32 %s222, 1
        %s576 = scalar_lea.sflag [#allocation9], %s575
        %s577 = sand.u32 %s222, 1
        %s578 = smul.addr %s577, 64
        %s579 = scalar_lea.vmem [#allocation8], %s578
        // Predicated region
        $region53: #{tpu_custom_call.1} parent=47 // pred_check
          %p580 = pneg %p206
        $region54: #{tpu_custom_call.1} parent=47 // pred_check_branch
          %582 = sbr.rel (%p580) target = $region56
        $region55: #{tpu_custom_call.1} parent=47 // pred_region
          %s583 = smul.u32 8, %s36
          %s585 = ssub.s32 1024, 1024
          %586 = vsyncadd %s571, %s585
          %s587 = smul.addr %s583, 128
          %s588 = scalar_lea.hbm %s8, %s587
          %s590 = sshll.u32 %s574, 4
          %s591 = int_to_ptr.vmem [resolvable:$true] %s590
          %593 = dma.vmem_to_hbm [thread:$0]  %s591, 1024, %s588, %s571
        $region56: #{tpu_custom_call.1} parent=47 // pred_fallthru
          _
        // Predicated region
        $region57: #{tpu_custom_call.1} parent=47 // pred_check
          %p594 = pneg %p232
        $region58: #{tpu_custom_call.1} parent=47 // pred_check_branch
          %596 = sbr.rel (%p594) target = $region60
        $region59: #{tpu_custom_call.1} parent=47 // pred_region
          %s597 = smul.u32 8, %s36
          %s599 = ssub.s32 1024, 1024
          %600 = vsyncadd %s576, %s599
          %s601 = smul.addr %s597, 128
          %s602 = scalar_lea.hbm %s9, %s601
          %s604 = sshll.u32 %s579, 4
          %s605 = int_to_ptr.vmem [resolvable:$true] %s604
          %607 = dma.vmem_to_hbm [thread:$0]  %s605, 1024, %s602, %s576
        $region60: #{tpu_custom_call.1} parent=47 // pred_fallthru
          _
      $region48: #{tpu_custom_call.1} parent=5 // pred_fallthru
        _
      %p608 = scmp.le.s32.totalorder 2, %s31
      // Predicated region
      $region61: #{tpu_custom_call.1} parent=5 // pred_check
        %p609 = pneg %p608
      $region62: #{tpu_custom_call.1} parent=5 // pred_check_branch
        %611 = sbr.rel (%p609) target = $region64
      $region63: #{tpu_custom_call.1} parent=5 // pred_region
        %s612 = ssub.s32 %s31, 2
        // Predicated region
        $region65: #{tpu_custom_call.1} parent=63 // pred_check
          %p613 = pneg %p212
        $region66: #{tpu_custom_call.1} parent=63 // pred_check_branch
          %615 = sbr.rel (%p613) target = $region68
        $region67: #{tpu_custom_call.1} parent=63 // pred_region
          %s616 = sand.u32 %s197, 1
          %s617 = scalar_lea.sflag [#allocation6], %s616
          %s618 = sand.u32 %s197, 1
          %s619 = smul.addr %s618, 64
          %s620 = scalar_lea.vmem [#allocation7], %s619
          %621 = dma.done %s617, 1024
        $region68: #{tpu_custom_call.1} parent=63 // pred_fallthru
          _
        // Predicated region
        $region69: #{tpu_custom_call.1} parent=63 // pred_check
          %p622 = pneg %p238
        $region70: #{tpu_custom_call.1} parent=63 // pred_check_branch
          %624 = sbr.rel (%p622) target = $region72
        $region71: #{tpu_custom_call.1} parent=63 // pred_region
          %s625 = sand.u32 %s223, 1
          %s626 = scalar_lea.sflag [#allocation9], %s625
          %s627 = sand.u32 %s223, 1
          %s628 = smul.addr %s627, 64
          %s629 = scalar_lea.vmem [#allocation8], %s628
          %630 = dma.done %s626, 1024
        $region72: #{tpu_custom_call.1} parent=63 // pred_fallthru
          _
      $region64: #{tpu_custom_call.1} parent=5 // pred_fallthru
        _
    $region6: #{tpu_custom_call.1} parent=1 // loop_footer
      %s35 = sadd.s32 1, %s31
    $region7: #{tpu_custom_call.1} parent=1 // loop_footer_branch
      %30 = sbr.rel target = $region3
    $region8: #{tpu_custom_call.1} parent=1 // loop_exit
      _
    %631 = vsyncpa [#allocation5], 1
    %s632 = scalar_lea.sflag [#allocation5], 1
    %633 = vsyncpa %s632, 1
    %634 = vsyncpa [#allocation6], 1
    %s635 = scalar_lea.sflag [#allocation6], 1
    %636 = vsyncpa %s635, 1
    %637 = vsyncpa [#allocation9], 1
    %s638 = scalar_lea.sflag [#allocation9], 1
    %639 = vsyncpa %s638, 1

</llo_original>
